<compile_context>
chip_gen: v5e
topology: v5e:2x2
jax: 0.10.0
libtpu: 0.0.40
codegen_flags: <defaults>
</compile_context>

<pallas_src>
import functools
import math

import jax
import jax.numpy as jnp
from jax import lax
from jax.experimental import pallas as pl
from jax.experimental.pallas import tpu as pltpu

GN_EPS = 1e-5            # PyTorch nn.GroupNorm default
NEG_INF = -1.0e30        # finite "minus infinity" for the online-softmax init
VMEM_LIMIT_BYTES = 48 * 1024 * 1024   # headroom below v7x's 64 MiB physical VMEM


def _pick_tile(total, cap=256):
    """Largest tile <= cap that evenly divides `total` (fallback: total)."""
    for cand in (512, 256, 128, 64, 32, 16, 8):
        if cand <= cap and total % cand == 0:
            return cand
    return total


# --------------------------------------------------------------------------
# Kernel 1: GroupNorm statistics -> per-channel scale/shift (per batch elem).
# Two-pass variance (mean first, then centered squares) for better numerics.
# --------------------------------------------------------------------------
def gn_stats_kernel(x_ref, gmat_ref, gamma_ref, beta_ref, scale_ref, shift_ref):
    x = x_ref[0]                                   # (HW, C) f32
    hw, c = x.shape
    gmat = gmat_ref[...]                           # (C, G) one-hot channel->group
    g = gmat.shape[1]
    denom = float(hw * (c // g))
    contract_g = (((1,), (1,)), ((), ()))          # contract the G axes

    # pass 1: per-group mean
    ch_sum = jnp.sum(x, axis=0, keepdims=True)                                  # (1, C)
    g_mean = jnp.dot(ch_sum, gmat, preferred_element_type=jnp.float32) / denom  # (1, G)
    mean_c = lax.dot_general(g_mean, gmat, contract_g,
                             preferred_element_type=jnp.float32)                # (1, C)

    # pass 2: per-group variance of centered values
    xc = x - mean_c
    ch_sq = jnp.sum(xc * xc, axis=0, keepdims=True)                             # (1, C)
    g_var = jnp.dot(ch_sq, gmat, preferred_element_type=jnp.float32) / denom    # (1, G)
    var_c = lax.dot_general(g_var, gmat, contract_g,
                            preferred_element_type=jnp.float32)                 # (1, C)

    inv_std = lax.rsqrt(var_c + GN_EPS)
    scale = gamma_ref[...] * inv_std               # fold gamma into the scale
    shift = beta_ref[...] - mean_c * scale
    scale_ref[0] = scale
    shift_ref[0] = shift


# --------------------------------------------------------------------------
# Kernel 2: apply GroupNorm + Q/K/V projections (bf16 MXU inputs, f32 accum).
# Softmax 1/sqrt(C) is folded into Q here (C*HW mults instead of HW^2).
# --------------------------------------------------------------------------
def gn_qkv_kernel(x_ref, scale_ref, shift_ref,
                  wq_ref, wk_ref, wv_ref, bq_ref, bk_ref, bv_ref,
                  q_ref, k_ref, v_ref, *, sm_scale):
    x = x_ref[0]                                   # (tr, C) f32
    xn = x * scale_ref[0] + shift_ref[0]           # GroupNorm apply (f32)
    xn_b = xn.astype(jnp.bfloat16)

    q = jnp.dot(xn_b, wq_ref[...], preferred_element_type=jnp.float32) + bq_ref[...]
    k = jnp.dot(xn_b, wk_ref[...], preferred_element_type=jnp.float32) + bk_ref[...]
    v = jnp.dot(xn_b, wv_ref[...], preferred_element_type=jnp.float32) + bv_ref[...]

    q_ref[0] = (q * sm_scale).astype(jnp.bfloat16)
    k_ref[0] = k.astype(jnp.bfloat16)
    v_ref[0] = v.astype(jnp.bfloat16)


# --------------------------------------------------------------------------
# Kernel 3: flash attention (online softmax) + output projection + residual.
# grid = (N, HW//tq, HW//tk); KV axis innermost / "arbitrary".
# --------------------------------------------------------------------------
def flash_attn_kernel(q_ref, k_ref, v_ref, x_ref, wo_ref, bo_ref,
                      o_ref, m_scr, l_scr, acc_scr):
    ki = pl.program_id(2)

    @pl.when(ki == 0)
    def _():
        m_scr[...] = jnp.full(m_scr.shape, NEG_INF, dtype=jnp.float32)
        l_scr[...] = jnp.zeros(l_scr.shape, dtype=jnp.float32)
        acc_scr[...] = jnp.zeros(acc_scr.shape, dtype=jnp.float32)

    q = q_ref[0]                                   # (tq, C) bf16, pre-scaled
    k = k_ref[0]                                   # (tk, C) bf16
    v = v_ref[0]                                   # (tk, C) bf16

    # scores: contract the C axes directly (no materialized k.T)
    s = lax.dot_general(q, k, (((1,), (1,)), ((), ())),
                        preferred_element_type=jnp.float32)          # (tq, tk)

    m_prev = m_scr[...]                                               # (tq, 1)
    m_new = jnp.maximum(m_prev, jnp.max(s, axis=-1, keepdims=True))
    alpha = jnp.exp(m_prev - m_new)
    p = jnp.exp(s - m_new)                                            # (tq, tk) f32
    l_scr[...] = alpha * l_scr[...] + jnp.sum(p, axis=-1, keepdims=True)
    acc_scr[...] = alpha * acc_scr[...] + jnp.dot(
        p.astype(jnp.bfloat16), v, preferred_element_type=jnp.float32)
    m_scr[...] = m_new

    @pl.when(ki == pl.num_programs(2) - 1)
    def _():
        attn = acc_scr[...] * pl.reciprocal(l_scr[...], approx=True)  # (tq, C)
        out = jnp.dot(attn.astype(jnp.bfloat16), wo_ref[...],
                      preferred_element_type=jnp.float32) + bo_ref[...]
        o_ref[0] = (out + x_ref[0]).astype(o_ref.dtype)               # residual


# --------------------------------------------------------------------------
# Wrapper
# --------------------------------------------------------------------------
def attention_block(x_nchw, params, *, tq=None, tk=None, tr=None):
    """x_nchw: (N, C, H, W) float32.  params: dict from init_params."""
    n, c, h, w = x_nchw.shape
    hw = h * w
    tq = tq or _pick_tile(hw, 256)
    tk = tk or _pick_tile(hw, 256)
    tr = tr or _pick_tile(hw, 256)

    x_seq = jnp.transpose(x_nchw.reshape(n, c, hw), (0, 2, 1))  # (N, HW, C) f32

    gmat = params["gmat"]          # (C, G) f32 one-hot
    gamma = params["gamma"]        # (1, C) f32
    beta = params["beta"]          # (1, C) f32
    # bf16 weights for MXU peak rate (f32 accumulation in-kernel); biases stay f32.
    wq_b = params["wq_t"].astype(jnp.bfloat16)
    wk_b = params["wk_t"].astype(jnp.bfloat16)
    wv_b = params["wv_t"].astype(jnp.bfloat16)
    wo_b = params["wo_t"].astype(jnp.bfloat16)
    bq, bk, bv, bo = params["bq"], params["bk"], params["bv"], params["bo"]

    cparams = lambda sem: pltpu.CompilerParams(
        dimension_semantics=sem, vmem_limit_bytes=VMEM_LIMIT_BYTES)

    # -- stage 1: GroupNorm scale/shift per batch element ------------------
    full2d = lambda arr: pl.BlockSpec(arr.shape, lambda i: (0, 0))
    scale, shift = pl.pallas_call(
        gn_stats_kernel,
        out_shape=(jax.ShapeDtypeStruct((n, 1, c), jnp.float32),
                   jax.ShapeDtypeStruct((n, 1, c), jnp.float32)),
        grid_spec=pltpu.PrefetchScalarGridSpec(
            num_scalar_prefetch=0,
            grid=(n,),
            in_specs=[
                pl.BlockSpec((1, hw, c), lambda i: (i, 0, 0)),
                full2d(gmat), full2d(gamma), full2d(beta),
            ],
            out_specs=[pl.BlockSpec((1, 1, c), lambda i: (i, 0, 0))] * 2,
        ),
        compiler_params=cparams(("parallel",)),
    )(x_seq, gmat, gamma, beta)

    # -- stage 2: GroupNorm apply + Q/K/V projections -----------------------
    # NOTE: weight/bias specs are grid-invariant (constant index_map), so
    # Pallas does not re-fetch them across grid steps.
    wspec2 = lambda arr: pl.BlockSpec(arr.shape, lambda b, r: (0, 0))
    q, k, v = pl.pallas_call(
        functools.partial(gn_qkv_kernel, sm_scale=1.0 / math.sqrt(c)),
        out_shape=(jax.ShapeDtypeStruct((n, hw, c), jnp.bfloat16),) * 3,
        grid_spec=pltpu.PrefetchScalarGridSpec(
            num_scalar_prefetch=0,
            grid=(n, hw // tr),
            in_specs=[
                pl.BlockSpec((1, tr, c), lambda b, r: (b, r, 0)),   # x tile
                pl.BlockSpec((1, 1, c), lambda b, r: (b, 0, 0)),    # scale
                pl.BlockSpec((1, 1, c), lambda b, r: (b, 0, 0)),    # shift
                wspec2(wq_b), wspec2(wk_b), wspec2(wv_b),
                wspec2(bq), wspec2(bk), wspec2(bv),
            ],
            out_specs=[pl.BlockSpec((1, tr, c), lambda b, r: (b, r, 0))] * 3,
        ),
        compiler_params=cparams(("parallel", "parallel")),
    )(x_seq, scale, shift, wq_b, wk_b, wv_b, bq, bk, bv)

    # -- stage 3: flash attention + out projection + residual --------------
    wspec3 = lambda arr: pl.BlockSpec(arr.shape, lambda b, qi, ki: (0, 0))
    out_seq = pl.pallas_call(
        flash_attn_kernel,
        out_shape=jax.ShapeDtypeStruct((n, hw, c), x_nchw.dtype),
        grid_spec=pltpu.PrefetchScalarGridSpec(
            num_scalar_prefetch=0,
            grid=(n, hw // tq, hw // tk),
            in_specs=[
                pl.BlockSpec((1, tq, c), lambda b, qi, ki: (b, qi, 0)),  # q tile
                pl.BlockSpec((1, tk, c), lambda b, qi, ki: (b, ki, 0)),  # k tile
                pl.BlockSpec((1, tk, c), lambda b, qi, ki: (b, ki, 0)),  # v tile
                pl.BlockSpec((1, tq, c), lambda b, qi, ki: (b, qi, 0)),  # residual x
                wspec3(wo_b), wspec3(bo),
            ],
            out_specs=pl.BlockSpec((1, tq, c), lambda b, qi, ki: (b, qi, 0)),
            scratch_shapes=[
                pltpu.VMEM((tq, 1), jnp.float32),   # m (running max)
                pltpu.VMEM((tq, 1), jnp.float32),   # l (running denom)
                pltpu.VMEM((tq, c), jnp.float32),   # acc (unnormalized output)
            ],
        ),
        compiler_params=cparams(("parallel", "parallel", "arbitrary")),
    )(q, k, v, x_seq, wo_b, bo)

    return jnp.transpose(out_seq, (0, 2, 1)).reshape(n, c, h, w)


# --------------------------------------------------------------------------
# Parameters & pure-JAX reference
# --------------------------------------------------------------------------
def init_params(key, channels, num_groups=32):
    c = channels
    ks = jax.random.split(key, 8)
    scale = 0.05
    gamma = (1.0 + scale * jax.random.normal(ks[0], (1, c))).astype(jnp.float32)
    beta = (scale * jax.random.normal(ks[1], (1, c))).astype(jnp.float32)
    wq_t = (scale * jax.random.normal(ks[2], (c, c))).astype(jnp.float32)
    wk_t = (scale * jax.random.normal(ks[3], (c, c))).astype(jnp.float32)
    wv_t = (scale * jax.random.normal(ks[4], (c, c))).astype(jnp.float32)
    wo_t = (scale * jax.random.normal(ks[5], (c, c))).astype(jnp.float32)
    b_in = (scale * jax.random.normal(ks[6], (1, 3 * c))).astype(jnp.float32)
    bq, bk, bv = b_in[:, :c], b_in[:, c:2 * c], b_in[:, 2 * c:]
    bo = (scale * jax.random.normal(ks[7], (1, c))).astype(jnp.float32)
    ch_group = jnp.arange(c) // (c // num_groups)
    gmat = jax.nn.one_hot(ch_group, num_groups, dtype=jnp.float32)
    return dict(gmat=gmat, gamma=gamma, beta=beta,
                wq_t=wq_t, wk_t=wk_t, wv_t=wv_t, wo_t=wo_t,
                bq=bq, bk=bk, bv=bv, bo=bo)


def reference(x_nchw, params):
    """Pure-JAX (f32) reference mirroring the PyTorch forward."""
    n, c, h, w = x_nchw.shape
    g = params["gmat"].shape[1]
    xg = x_nchw.reshape(n, g, c // g, h * w)
    mean = xg.mean(axis=(2, 3), keepdims=True)
    var = ((xg - mean) ** 2).mean(axis=(2, 3), keepdims=True)
    xn = (xg - mean) / jnp.sqrt(var + GN_EPS)
    xn = xn.reshape(n, c, h, w) * params["gamma"].reshape(1, c, 1, 1) \
         + params["beta"].reshape(1, c, 1, 1)
    xs = jnp.transpose(xn.reshape(n, c, h * w), (0, 2, 1))      # (N, HW, C)
    q = xs @ params["wq_t"] + params["bq"]
    k = xs @ params["wk_t"] + params["bk"]
    v = xs @ params["wv_t"] + params["bv"]
    s = (q @ jnp.swapaxes(k, -1, -2)) / math.sqrt(c)
    p = jax.nn.softmax(s, axis=-1)
    o = p @ v
    o = o @ params["wo_t"] + params["bo"]
    o = jnp.transpose(o, (0, 2, 1)).reshape(n, c, h, w)
    return o + x_nchw


if __name__ == "__main__":
    # Small shapes consistent with the module: GroupNorm(32, C) needs C % 32 == 0.
    # C=128 keeps the output lane-dense; HW=1024 exercises multiple Q/KV tiles.
    N, C, H, W = 2, 128, 32, 32
    key = jax.random.PRNGKey(0)
    kx, kp = jax.random.split(key)
    x = jax.random.normal(kx, (N, C, H, W), dtype=jnp.float32)
    params = init_params(kp, C, num_groups=32)

    out = jax.block_until_ready(attention_block(x, params))
    ref = reference(x, params)

    assert out.shape == (N, C, H, W)
    err = float(jnp.max(jnp.abs(out - ref)))
    # bf16 MXU inputs with f32 accumulation: allow a small tolerance vs f32 ref.
    assert err < 1e-2, f"mismatch vs pure-JAX reference: max|diff|={err}"

    print("KERNEL_OK")
</pallas_src>

<mosaic_0001>
module attributes {stable_mosaic.version = 11 : i64} {
  func.func @gn_stats_kernel(%arg0: i32, %arg1: memref<1x1024x128xf32, #tpu.memory_space<vmem>>, %arg2: memref<128x32xf32, #tpu.memory_space<vmem>>, %arg3: memref<1x128xf32, #tpu.memory_space<vmem>>, %arg4: memref<1x128xf32, #tpu.memory_space<vmem>>, %arg5: memref<1x1x128xf32, #tpu.memory_space<vmem>>, %arg6: memref<1x1x128xf32, #tpu.memory_space<vmem>>) attributes {dimension_semantics = [#tpu.dimension_semantics<parallel>], iteration_bounds = array<i64: 2>, scalar_prefetch = 0 : i64, scratch_operands = 0 : i64, tpu.core_type = #tpu.core_type<tc>, window_params = [{transform_indices = @transform_0, window_bounds = array<i64: 1, 1024, 128>}, {pipeline_mode = #tpu.pipeline_mode<synchronous>, transform_indices = @transform_1, window_bounds = array<i64: 128, 32>}, {pipeline_mode = #tpu.pipeline_mode<synchronous>, transform_indices = @transform_2, window_bounds = array<i64: 1, 128>}, {pipeline_mode = #tpu.pipeline_mode<synchronous>, transform_indices = @transform_3, window_bounds = array<i64: 1, 128>}, {transform_indices = @transform_4, window_bounds = array<i64: 1, 1, 128>}, {transform_indices = @transform_5, window_bounds = array<i64: 1, 1, 128>}]} {
    %c0 = arith.constant 0 : index
    %c0_0 = arith.constant 0 : index
    %c0_1 = arith.constant 0 : index
    %0 = vector.load %arg1[%c0, %c0_0, %c0_1] : memref<1x1024x128xf32, #tpu.memory_space<vmem>>, vector<1x1024x128xf32>
    %1 = vector.shape_cast %0 : vector<1x1024x128xf32> to vector<1024x128xf32>
    %c0_2 = arith.constant 0 : index
    %c0_3 = arith.constant 0 : index
    %2 = vector.load %arg2[%c0_2, %c0_3] : memref<128x32xf32, #tpu.memory_space<vmem>>, vector<128x32xf32>
    %cst = arith.constant dense<0.000000e+00> : vector<128xf32>
    %3 = vector.multi_reduction <add>, %1, %cst [0] : vector<1024x128xf32> to vector<128xf32>
    %4 = vector.shape_cast %3 : vector<128xf32> to vector<1x128xf32>
    %cst_4 = arith.constant dense<0.000000e+00> : vector<1x32xf32>
    %5 = tpu.matmul %4, %2, %cst_4 {dimension_numbers = #tpu.dot_dimension_numbers<[1], [0], [0], [1], [0, 0, 1, 1], [], []>} : vector<1x128xf32>, vector<128x32xf32>, vector<1x32xf32> -> vector<1x32xf32>
    %cst_5 = arith.constant 4.096000e+03 : f32
    %6 = vector.broadcast %cst_5 : f32 to vector<1x32xf32>
    %7 = arith.divf %5, %6 : vector<1x32xf32>
    %cst_6 = arith.constant dense<0.000000e+00> : vector<1x128xf32>
    %8 = tpu.matmul %7, %2, %cst_6 {dimension_numbers = #tpu.dot_dimension_numbers<[1], [1], [0], [0], [0, 0, 1, 0], [], []>} : vector<1x32xf32>, vector<128x32xf32>, vector<1x128xf32> -> vector<1x128xf32>
    %9 = vector.broadcast %8 : vector<1x128xf32> to vector<1024x128xf32>
    %10 = arith.subf %1, %9 : vector<1024x128xf32>
    %11 = arith.mulf %10, %10 : vector<1024x128xf32>
    %cst_7 = arith.constant dense<0.000000e+00> : vector<128xf32>
    %12 = vector.multi_reduction <add>, %11, %cst_7 [0] : vector<1024x128xf32> to vector<128xf32>
    %13 = vector.shape_cast %12 : vector<128xf32> to vector<1x128xf32>
    %cst_8 = arith.constant dense<0.000000e+00> : vector<1x32xf32>
    %14 = tpu.matmul %13, %2, %cst_8 {dimension_numbers = #tpu.dot_dimension_numbers<[1], [0], [0], [1], [0, 0, 1, 1], [], []>} : vector<1x128xf32>, vector<128x32xf32>, vector<1x32xf32> -> vector<1x32xf32>
    %cst_9 = arith.constant 4.096000e+03 : f32
    %15 = vector.broadcast %cst_9 : f32 to vector<1x32xf32>
    %16 = arith.divf %14, %15 : vector<1x32xf32>
    %cst_10 = arith.constant dense<0.000000e+00> : vector<1x128xf32>
    %17 = tpu.matmul %16, %2, %cst_10 {dimension_numbers = #tpu.dot_dimension_numbers<[1], [1], [0], [0], [0, 0, 1, 0], [], []>} : vector<1x32xf32>, vector<128x32xf32>, vector<1x128xf32> -> vector<1x128xf32>
    %cst_11 = arith.constant 9.99999974E-6 : f32
    %18 = vector.broadcast %cst_11 : f32 to vector<1x128xf32>
    %19 = arith.addf %17, %18 : vector<1x128xf32>
    %20 = math.rsqrt %19 : vector<1x128xf32>
    %c0_12 = arith.constant 0 : index
    %c0_13 = arith.constant 0 : index
    %21 = vector.load %arg3[%c0_12, %c0_13] : memref<1x128xf32, #tpu.memory_space<vmem>>, vector<1x128xf32>
    %22 = arith.mulf %21, %20 : vector<1x128xf32>
    %c0_14 = arith.constant 0 : index
    %c0_15 = arith.constant 0 : index
    %23 = vector.load %arg4[%c0_14, %c0_15] : memref<1x128xf32, #tpu.memory_space<vmem>>, vector<1x128xf32>
    %24 = arith.mulf %8, %22 : vector<1x128xf32>
    %25 = arith.subf %23, %24 : vector<1x128xf32>
    %c0_16 = arith.constant 0 : index
    %c0_17 = arith.constant 0 : index
    %c0_18 = arith.constant 0 : index
    %26 = vector.load %arg5[%c0_16, %c0_17, %c0_18] : memref<1x1x128xf32, #tpu.memory_space<vmem>>, vector<1x1x128xf32>
    %27 = vector.shape_cast %26 : vector<1x1x128xf32> to vector<1x128xf32>
    %28 = vector.shape_cast %22 : vector<1x128xf32> to vector<1x1x128xf32>
    tpu.vector_store %arg5[%c0_16, %c0_17, %c0_18], %28 {strides = array<i32>} : memref<1x1x128xf32, #tpu.memory_space<vmem>>, vector<1x1x128xf32>,
    %c0_19 = arith.constant 0 : index
    %c0_20 = arith.constant 0 : index
    %c0_21 = arith.constant 0 : index
    %29 = vector.load %arg6[%c0_19, %c0_20, %c0_21] : memref<1x1x128xf32, #tpu.memory_space<vmem>>, vector<1x1x128xf32>
    %30 = vector.shape_cast %29 : vector<1x1x128xf32> to vector<1x128xf32>
    %31 = vector.shape_cast %25 : vector<1x128xf32> to vector<1x1x128xf32>
    tpu.vector_store %arg6[%c0_19, %c0_20, %c0_21], %31 {strides = array<i32>} : memref<1x1x128xf32, #tpu.memory_space<vmem>>, vector<1x1x128xf32>,
    return
  }
  func.func @transform_0(%arg0: i32) -> (i32, i32, i32) {
    %c0_i32 = arith.constant 0 : i32
    %c0_i32_0 = arith.constant 0 : i32
    %c0_i32_1 = arith.constant 0 : i32
    return %arg0, %c0_i32, %c0_i32_0 : i32, i32, i32
  }
  func.func @transform_1(%arg0: i32) -> (i32, i32) {
    %c0_i32 = arith.constant 0 : i32
    %c0_i32_0 = arith.constant 0 : i32
    %c0_i32_1 = arith.constant 0 : i32
    return %c0_i32, %c0_i32_0 : i32, i32
  }
  func.func @transform_2(%arg0: i32) -> (i32, i32) {
    %c0_i32 = arith.constant 0 : i32
    %c0_i32_0 = arith.constant 0 : i32
    %c0_i32_1 = arith.constant 0 : i32
    return %c0_i32, %c0_i32_0 : i32, i32
  }
  func.func @transform_3(%arg0: i32) -> (i32, i32) {
    %c0_i32 = arith.constant 0 : i32
    %c0_i32_0 = arith.constant 0 : i32
    %c0_i32_1 = arith.constant 0 : i32
    return %c0_i32, %c0_i32_0 : i32, i32
  }
  func.func @transform_4(%arg0: i32) -> (i32, i32, i32) {
    %c0_i32 = arith.constant 0 : i32
    %c0_i32_0 = arith.constant 0 : i32
    %c0_i32_1 = arith.constant 0 : i32
    return %arg0, %c0_i32, %c0_i32_0 : i32, i32, i32
  }
  func.func @transform_5(%arg0: i32) -> (i32, i32, i32) {
    %c0_i32 = arith.constant 0 : i32
    %c0_i32_0 = arith.constant 0 : i32
    %c0_i32_1 = arith.constant 0 : i32
    return %arg0, %c0_i32, %c0_i32_0 : i32, i32, i32
  }
}

</mosaic_0001>

<llo_original>
// kernel: tpu_custom_call.1
$region0: #{tpu_custom_call.1}
  #allocation0 [shape = 'u32[]', space=smem, size = 0x4, offset = 0x4, fixed_abs, tag = 'smem constant byte address 0x4 - core index']
  #allocation1 [shape = 'u32[72,128]{1,0:T(1,128)}', space=vmem, size = 0x9000, scoped, tag = 'internal scratch']
  %s0 = inlined_call_operand.hbm [shape: f32[2,1024,128], index: 0, kind: input, shape index: {}]
  %s1 = inlined_call_operand.vmem [shape: f32[128,32], index: 1, kind: input, shape index: {}]
  %s2 = inlined_call_operand.vmem [shape: f32[1,128], index: 2, kind: input, shape index: {}]
  %s3 = inlined_call_operand.vmem [shape: f32[1,128], index: 3, kind: input, shape index: {}]
  %s4 = inlined_call_operand.hbm [shape: f32[2,1,128], index: 4, kind: output, shape index: {0}]
  %s5 = inlined_call_operand.hbm [shape: f32[2,1,128], index: 5, kind: output, shape index: {1}]
  %6 = xla_tuple %s4, %s5
  %s7 = sld [smem:[#allocation0]]
  $region61: #{tpu_custom_call.1} parent=0
    _
  %s9 = ssub.s32 1, %s7
  %s10 = scalar_select 0, %s9, %s7
  $region1: #{tpu_custom_call.1} parent=0
    #allocation2 [shape = 'u8[1048576]{0}', space=vmem, size = 0x100000, scoped, tag = 'input window, operand 0']
    #allocation3 [shape = 's32[2]{0}', space=sflag, size = 0x8, scoped, tag = 'scoped memory for tpu_custom_call.1']
    #allocation4 [shape = 's32[2]{0}', space=sflag, size = 0x8, scoped, tag = 'scoped memory for tpu_custom_call.1']
    #allocation5 [shape = 'u8[1024]{0}', space=vmem, size = 0x400, scoped, tag = 'output window, operand 0']
    #allocation6 [shape = 'u8[1024]{0}', space=vmem, size = 0x400, scoped, tag = 'output window, operand 1']
    #allocation7 [shape = 's32[2]{0}', space=sflag, size = 0x8, scoped, tag = 'scoped memory for tpu_custom_call.1']
    %11 = vsyncpa [#allocation3], 0
    %s12 = scalar_lea.sflag [#allocation3], 1
    %13 = vsyncpa %s12, 0
    %14 = vsyncpa [#allocation4], 0
    %s15 = scalar_lea.sflag [#allocation4], 1
    %16 = vsyncpa %s15, 0
    %17 = vsyncpa [#allocation7], 0
    %s18 = scalar_lea.sflag [#allocation7], 1
    %19 = vsyncpa %s18, 0
    loop: start=0, step=1, limit=4
    $region2: #{tpu_custom_call.1} parent=1 // loop_pre_header
      _
    $region3: #{tpu_custom_call.1} parent=1 // loop_header
      %s21 = sphi 0, %s25
      %p22 = scmp.ge.s32.totalorder %s21, 4
      %s31 = sphi 0, %s33
      %s34 = sphi 0, %s31
      %s35 = sphi 0, %s34
      %s51 = sphi 0, %s35
      %s55 = sphi 0, %s55
      %s57 = sphi 0, %s55
      %s58 = sphi 0, %s57
      %s72 = sphi 0, %s58
      %s76 = sphi 0, %s76
      %s78 = sphi 0, %s76
      %s79 = sphi 0, %s78
      %s93 = sphi 0, %s79
      %s97 = sphi 0, %s97
      %s99 = sphi 0, %s97
      %s100 = sphi 0, %s99
      %s114 = sphi 0, %s100
      %s120 = sphi 0, %s122
      %s123 = sphi 0, %s120
      %s124 = sphi 0, %s123
      %s140 = sphi 0, %s124
      %s146 = sphi 0, %s148
      %s149 = sphi 0, %s146
      %s150 = sphi 0, %s149
      %s166 = sphi 0, %s150
    $region4: #{tpu_custom_call.1} parent=1 // loop_header_branch
      %24 = sbr.rel (%p22) target = $region8
    $region5: #{tpu_custom_call.1} parent=1 // loop_body
      %s26 = ssub.s32 %s21, 1
      %s27 = ssub.s32 %s21, 2
      %s28 = sadd.s32 %s21, 1
      %s29 = ssub.s32 %s21, %s28
      %p30 = scmp.eq.s32.totalorder %s29, 0
      %s32 = sadd.s32 %s31, 1
      %s33 = scalar_select %p30, %s31, %s32
      %p36 = pneg %p30
      %p37 = scmp.eq.s32.totalorder %s21, 1
      %p38 = por %p36, %p37
      %p39 = scmp.ne.s32.totalorder %s31, %s34
      %p40 = scmp.eq.s32.totalorder %s21, 0
      %p41 = por %p39, %p40
      %p42 = scmp.ne.s32.totalorder %s31, %s34
      %p43 = scmp.eq.s32.totalorder %s26, 1
      %p44 = por %p42, %p43
      %p45 = scmp.ne.s32.totalorder %s34, %s35
      %p46 = scmp.eq.s32.totalorder %s26, 0
      %p47 = por %p45, %p46
      %p48 = scmp.ne.s32.totalorder %s34, %s35
      %p49 = scmp.eq.s32.totalorder %s27, 1
      %p50 = por %p48, %p49
      %p52 = scmp.ne.s32.totalorder %s35, %s51
      %p53 = scmp.eq.s32.totalorder %s27, 0
      %p54 = por %p52, %p53
      %s56 = sadd.s32 %s55, 1
      %p59 = scmp.eq.s32.totalorder %s21, 1
      %p60 = scmp.ne.s32.totalorder %s55, %s57
      %p61 = scmp.eq.s32.totalorder %s21, 0
      %p62 = por %p60, %p61
      %p63 = scmp.ne.s32.totalorder %s55, %s57
      %p64 = scmp.eq.s32.totalorder %s26, 1
      %p65 = por %p63, %p64
      %p66 = scmp.ne.s32.totalorder %s57, %s58
      %p67 = scmp.eq.s32.totalorder %s26, 0
      %p68 = por %p66, %p67
      %p69 = scmp.ne.s32.totalorder %s57, %s58
      %p70 = scmp.eq.s32.totalorder %s27, 1
      %p71 = por %p69, %p70
      %p73 = scmp.ne.s32.totalorder %s58, %s72
      %p74 = scmp.eq.s32.totalorder %s27, 0
      %p75 = por %p73, %p74
      %s77 = sadd.s32 %s76, 1
      %p80 = scmp.eq.s32.totalorder %s21, 1
      %p81 = scmp.ne.s32.totalorder %s76, %s78
      %p82 = scmp.eq.s32.totalorder %s21, 0
      %p83 = por %p81, %p82
      %p84 = scmp.ne.s32.totalorder %s76, %s78
      %p85 = scmp.eq.s32.totalorder %s26, 1
      %p86 = por %p84, %p85
      %p87 = scmp.ne.s32.totalorder %s78, %s79
      %p88 = scmp.eq.s32.totalorder %s26, 0
      %p89 = por %p87, %p88
      %p90 = scmp.ne.s32.totalorder %s78, %s79
      %p91 = scmp.eq.s32.totalorder %s27, 1
      %p92 = por %p90, %p91
      %p94 = scmp.ne.s32.totalorder %s79, %s93
      %p95 = scmp.eq.s32.totalorder %s27, 0
      %p96 = por %p94, %p95
      %s98 = sadd.s32 %s97, 1
      %p101 = scmp.eq.s32.totalorder %s21, 1
      %p102 = scmp.ne.s32.totalorder %s97, %s99
      %p103 = scmp.eq.s32.totalorder %s21, 0
      %p104 = por %p102, %p103
      %p105 = scmp.ne.s32.totalorder %s97, %s99
      %p106 = scmp.eq.s32.totalorder %s26, 1
      %p107 = por %p105, %p106
      %p108 = scmp.ne.s32.totalorder %s99, %s100
      %p109 = scmp.eq.s32.totalorder %s26, 0
      %p110 = por %p108, %p109
      %p111 = scmp.ne.s32.totalorder %s99, %s100
      %p112 = scmp.eq.s32.totalorder %s27, 1
      %p113 = por %p111, %p112
      %p115 = scmp.ne.s32.totalorder %s100, %s114
      %p116 = scmp.eq.s32.totalorder %s27, 0
      %p117 = por %p115, %p116
      %s118 = ssub.s32 %s21, %s28
      %p119 = scmp.eq.s32.totalorder %s118, 0
      %s121 = sadd.s32 %s120, 1
      %s122 = scalar_select %p119, %s120, %s121
      %p125 = pneg %p119
      %p126 = scmp.eq.s32.totalorder %s21, 1
      %p127 = por %p125, %p126
      %p128 = scmp.ne.s32.totalorder %s120, %s123
      %p129 = scmp.eq.s32.totalorder %s21, 0
      %p130 = por %p128, %p129
      %p131 = scmp.ne.s32.totalorder %s120, %s123
      %p132 = scmp.eq.s32.totalorder %s26, 1
      %p133 = por %p131, %p132
      %p134 = scmp.ne.s32.totalorder %s123, %s124
      %p135 = scmp.eq.s32.totalorder %s26, 0
      %p136 = por %p134, %p135
      %p137 = scmp.ne.s32.totalorder %s123, %s124
      %p138 = scmp.eq.s32.totalorder %s27, 1
      %p139 = por %p137, %p138
      %p141 = scmp.ne.s32.totalorder %s124, %s140
      %p142 = scmp.eq.s32.totalorder %s27, 0
      %p143 = por %p141, %p142
      %s144 = ssub.s32 %s21, %s28
      %p145 = scmp.eq.s32.totalorder %s144, 0
      %s147 = sadd.s32 %s146, 1
      %s148 = scalar_select %p145, %s146, %s147
      %p151 = pneg %p145
      %p152 = scmp.eq.s32.totalorder %s21, 1
      %p153 = por %p151, %p152
      %p154 = scmp.ne.s32.totalorder %s146, %s149
      %p155 = scmp.eq.s32.totalorder %s21, 0
      %p156 = por %p154, %p155
      %p157 = scmp.ne.s32.totalorder %s146, %s149
      %p158 = scmp.eq.s32.totalorder %s26, 1
      %p159 = por %p157, %p158
      %p160 = scmp.ne.s32.totalorder %s149, %s150
      %p161 = scmp.eq.s32.totalorder %s26, 0
      %p162 = por %p160, %p161
      %p163 = scmp.ne.s32.totalorder %s149, %s150
      %p164 = scmp.eq.s32.totalorder %s27, 1
      %p165 = por %p163, %p164
      %p167 = scmp.ne.s32.totalorder %s150, %s166
      %p168 = scmp.eq.s32.totalorder %s27, 0
      %p169 = por %p167, %p168
      %p170 = scmp.le.s32.totalorder 1, %s21
      %p171 = scmp.lt.s32.totalorder %s21, 3
      %p172 = pnand %p170, %p171
      %p173 = pneg %p172
      // Predicated region
      $region9: #{tpu_custom_call.1} parent=5 // pred_check
        _
      $region10: #{tpu_custom_call.1} parent=5 // pred_check_branch
        %175 = sbr.rel (%p172) target = $region12
      $region11: #{tpu_custom_call.1} parent=5 // pred_region
        %s176 = ssub.s32 %s21, 1
        // Predicated region
        $region13: #{tpu_custom_call.1} parent=11 // pred_check
          %p177 = pneg %p68
        $region14: #{tpu_custom_call.1} parent=11 // pred_check_branch
          %179 = sbr.rel (%p177) target = $region16
        $region15: #{tpu_custom_call.1} parent=11 // pred_region
          _
        $region16: #{tpu_custom_call.1} parent=11 // pred_fallthru
          _
        // Predicated region
        $region17: #{tpu_custom_call.1} parent=11 // pred_check
          %p180 = pneg %p89
        $region18: #{tpu_custom_call.1} parent=11 // pred_check_branch
          %182 = sbr.rel (%p180) target = $region20
        $region19: #{tpu_custom_call.1} parent=11 // pred_region
          _
        $region20: #{tpu_custom_call.1} parent=11 // pred_fallthru
          _
        // Predicated region
        $region21: #{tpu_custom_call.1} parent=11 // pred_check
          %p183 = pneg %p110
        $region22: #{tpu_custom_call.1} parent=11 // pred_check_branch
          %185 = sbr.rel (%p183) target = $region24
        $region23: #{tpu_custom_call.1} parent=11 // pred_region
          _
        $region24: #{tpu_custom_call.1} parent=11 // pred_fallthru
          _
      $region12: #{tpu_custom_call.1} parent=5 // pred_fallthru
        _
      %p186 = scmp.lt.s32.totalorder %s21, 2
      // Predicated region
      $region25: #{tpu_custom_call.1} parent=5 // pred_check
        %p187 = pneg %p186
      $region26: #{tpu_custom_call.1} parent=5 // pred_check_branch
        %189 = sbr.rel (%p187) target = $region28
      $region27: #{tpu_custom_call.1} parent=5 // pred_region
        // Predicated region
        $region29: #{tpu_custom_call.1} parent=27 // pred_check
          %p190 = pneg %p41
        $region30: #{tpu_custom_call.1} parent=27 // pred_check_branch
          %192 = sbr.rel (%p190) target = $region32
        $region31: #{tpu_custom_call.1} parent=27 // pred_region
          %s193 = sand.u32 %s31, 1
          %s194 = scalar_lea.sflag [#allocation3], %s193
          %s195 = sand.u32 %s31, 1
          %s196 = smul.addr %s195, 1024
          %s197 = scalar_lea.vmem [#allocation2], %s196
          %199 = vsyncadd %s194, 0
          %s200 = smul.addr %s21, 128
          %s201 = smul.addr %s200, 8
          %s202 = scalar_lea.hbm %s0, %s201
          %s203 = sshll.u32 %s202, 4
          %s204 = int_to_ptr.hbm [resolvable:$true] %s203
          %s205 = sshll.u32 %s197, 4
          %s206 = int_to_ptr.vmem [resolvable:$true] %s205
          %211 = dma.hbm_to_vmem [thread:$0]  %s204, 16384, %s206, %s194, 128, 128, 8
        $region32: #{tpu_custom_call.1} parent=27 // pred_fallthru
          _
      $region28: #{tpu_custom_call.1} parent=5 // pred_fallthru
        _
      %p212 = scmp.le.s32.totalorder 1, %s21
      %p213 = scmp.lt.s32.totalorder %s21, 3
      %p214 = pnand %p212, %p213
      %p215 = pneg %p214
      // Predicated region
      $region33: #{tpu_custom_call.1} parent=5 // pred_check
        _
      $region34: #{tpu_custom_call.1} parent=5 // pred_check_branch
        %217 = sbr.rel (%p214) target = $region36
      $region35: #{tpu_custom_call.1} parent=5 // pred_region
        %s218 = ssub.s32 %s21, 1
        %s219 = sand.u32 %s34, 1
        %s220 = scalar_lea.sflag [#allocation3], %s219
        %s221 = sand.u32 %s34, 1
        %s222 = smul.addr %s221, 1024
        %s223 = scalar_lea.vmem [#allocation2], %s222
        // Predicated region
        $region37: #{tpu_custom_call.1} parent=35 // pred_check
          %p224 = pneg %p47
        $region38: #{tpu_custom_call.1} parent=35 // pred_check_branch
          %226 = sbr.rel (%p224) target = $region40
        $region39: #{tpu_custom_call.1} parent=35 // pred_region
          %228 = dma.done %s220, 16384
        $region40: #{tpu_custom_call.1} parent=35 // pred_fallthru
          _
        %s229 = sand.u32 %s34, 1
        %s230 = scalar_lea.sflag [#allocation3], %s229
        %s231 = sand.u32 %s34, 1
        %s232 = smul.addr %s231, 1024
        %s233 = scalar_lea.vmem [#allocation2], %s232
        %p234 = pneg %p47
        %p235 = pneg %p44
        %p236 = pneg %p68
        %p237 = pneg %p65
        %p238 = pneg %p89
        %p239 = pneg %p86
        %p240 = pneg %p110
        %p241 = pneg %p107
        %p242 = pneg %p136
        %p243 = pneg %p133
        %s244 = sand.u32 %s123, 1
        %s245 = scalar_lea.sflag [#allocation4], %s244
        %s246 = sand.u32 %s123, 1
        %s247 = scalar_lea.vmem [#allocation5], %s246
        %p248 = pneg %p162
        %p249 = pneg %p159
        %s250 = sand.u32 %s149, 1
        %s251 = scalar_lea.sflag [#allocation7], %s250
        %s252 = sand.u32 %s149, 1
        %s253 = scalar_lea.vmem [#allocation6], %s252
        %v254 = vld [vmem:[%s223] sm:$0xff]
        %v255 = vld [vmem:[%s223 + $0x8] sm:$0xff]
        %v256 = vld [vmem:[%s223 + $0x10] sm:$0xff]
        %v257 = vld [vmem:[%s223 + $0x18] sm:$0xff]
        %v258 = vld [vmem:[%s223 + $0x20] sm:$0xff]
        %v259 = vld [vmem:[%s223 + $0x28] sm:$0xff]
        %v260 = vld [vmem:[%s223 + $0x30] sm:$0xff]
        %v261 = vld [vmem:[%s223 + $0x38] sm:$0xff]
        %v262 = vld [vmem:[%s223 + $0x40] sm:$0xff]
        %v263 = vld [vmem:[%s223 + $0x48] sm:$0xff]
        %v264 = vld [vmem:[%s223 + $0x50] sm:$0xff]
        %v265 = vld [vmem:[%s223 + $0x58] sm:$0xff]
        %v266 = vld [vmem:[%s223 + $0x60] sm:$0xff]
        %v267 = vld [vmem:[%s223 + $0x68] sm:$0xff]
        %v268 = vld [vmem:[%s223 + $0x70] sm:$0xff]
        %v269 = vld [vmem:[%s223 + $0x78] sm:$0xff]
        %v270 = vld [vmem:[%s223 + $0x80] sm:$0xff]
        %v271 = vld [vmem:[%s223 + $0x88] sm:$0xff]
        %v272 = vld [vmem:[%s223 + $0x90] sm:$0xff]
        %v273 = vld [vmem:[%s223 + $0x98] sm:$0xff]
        %v274 = vld [vmem:[%s223 + $0xa0] sm:$0xff]
        %v275 = vld [vmem:[%s223 + $0xa8] sm:$0xff]
        %v276 = vld [vmem:[%s223 + $0xb0] sm:$0xff]
        %v277 = vld [vmem:[%s223 + $0xb8] sm:$0xff]
        %v278 = vld [vmem:[%s223 + $0xc0] sm:$0xff]
        %v279 = vld [vmem:[%s223 + $0xc8] sm:$0xff]
        %v280 = vld [vmem:[%s223 + $0xd0] sm:$0xff]
        %v281 = vld [vmem:[%s223 + $0xd8] sm:$0xff]
        %v282 = vld [vmem:[%s223 + $0xe0] sm:$0xff]
        %v283 = vld [vmem:[%s223 + $0xe8] sm:$0xff]
        %v284 = vld [vmem:[%s223 + $0xf0] sm:$0xff]
        %v285 = vld [vmem:[%s223 + $0xf8] sm:$0xff]
        %v286 = vld [vmem:[%s223 + $0x100] sm:$0xff]
        %v287 = vld [vmem:[%s223 + $0x108] sm:$0xff]
        %v288 = vld [vmem:[%s223 + $0x110] sm:$0xff]
        %v289 = vld [vmem:[%s223 + $0x118] sm:$0xff]
        %v290 = vld [vmem:[%s223 + $0x120] sm:$0xff]
        %v291 = vld [vmem:[%s223 + $0x128] sm:$0xff]
        %v292 = vld [vmem:[%s223 + $0x130] sm:$0xff]
        %v293 = vld [vmem:[%s223 + $0x138] sm:$0xff]
        %v294 = vld [vmem:[%s223 + $0x140] sm:$0xff]
        %v295 = vld [vmem:[%s223 + $0x148] sm:$0xff]
        %v296 = vld [vmem:[%s223 + $0x150] sm:$0xff]
        %v297 = vld [vmem:[%s223 + $0x158] sm:$0xff]
        %v298 = vld [vmem:[%s223 + $0x160] sm:$0xff]
        %v299 = vld [vmem:[%s223 + $0x168] sm:$0xff]
        %v300 = vld [vmem:[%s223 + $0x170] sm:$0xff]
        %v301 = vld [vmem:[%s223 + $0x178] sm:$0xff]
        %v302 = vld [vmem:[%s223 + $0x180] sm:$0xff]
        %v303 = vld [vmem:[%s223 + $0x188] sm:$0xff]
        %v304 = vld [vmem:[%s223 + $0x190] sm:$0xff]
        %v305 = vld [vmem:[%s223 + $0x198] sm:$0xff]
        %v306 = vld [vmem:[%s223 + $0x1a0] sm:$0xff]
        %v307 = vld [vmem:[%s223 + $0x1a8] sm:$0xff]
        %v308 = vld [vmem:[%s223 + $0x1b0] sm:$0xff]
        %v309 = vld [vmem:[%s223 + $0x1b8] sm:$0xff]
        %v310 = vld [vmem:[%s223 + $0x1c0] sm:$0xff]
        %v311 = vld [vmem:[%s223 + $0x1c8] sm:$0xff]
        %v312 = vld [vmem:[%s223 + $0x1d0] sm:$0xff]
        %v313 = vld [vmem:[%s223 + $0x1d8] sm:$0xff]
        %v314 = vld [vmem:[%s223 + $0x1e0] sm:$0xff]
        %v315 = vld [vmem:[%s223 + $0x1e8] sm:$0xff]
        %v316 = vld [vmem:[%s223 + $0x1f0] sm:$0xff]
        %v317 = vld [vmem:[%s223 + $0x1f8] sm:$0xff]
        %v318 = vld [vmem:[%s223 + $0x200] sm:$0xff]
        %v319 = vld [vmem:[%s223 + $0x208] sm:$0xff]
        %v320 = vld [vmem:[%s223 + $0x210] sm:$0xff]
        %v321 = vld [vmem:[%s223 + $0x218] sm:$0xff]
        %v322 = vld [vmem:[%s223 + $0x220] sm:$0xff]
        %v323 = vld [vmem:[%s223 + $0x228] sm:$0xff]
        %v324 = vld [vmem:[%s223 + $0x230] sm:$0xff]
        %v325 = vld [vmem:[%s223 + $0x238] sm:$0xff]
        %v326 = vld [vmem:[%s223 + $0x240] sm:$0xff]
        %v327 = vld [vmem:[%s223 + $0x248] sm:$0xff]
        %v328 = vld [vmem:[%s223 + $0x250] sm:$0xff]
        %v329 = vld [vmem:[%s223 + $0x258] sm:$0xff]
        %v330 = vld [vmem:[%s223 + $0x260] sm:$0xff]
        %v331 = vld [vmem:[%s223 + $0x268] sm:$0xff]
        %v332 = vld [vmem:[%s223 + $0x270] sm:$0xff]
        %v333 = vld [vmem:[%s223 + $0x278] sm:$0xff]
        %v334 = vld [vmem:[%s223 + $0x280] sm:$0xff]
        %v335 = vld [vmem:[%s223 + $0x288] sm:$0xff]
        %v336 = vld [vmem:[%s223 + $0x290] sm:$0xff]
        %v337 = vld [vmem:[%s223 + $0x298] sm:$0xff]
        %v338 = vld [vmem:[%s223 + $0x2a0] sm:$0xff]
        %v339 = vld [vmem:[%s223 + $0x2a8] sm:$0xff]
        %v340 = vld [vmem:[%s223 + $0x2b0] sm:$0xff]
        %v341 = vld [vmem:[%s223 + $0x2b8] sm:$0xff]
        %v342 = vld [vmem:[%s223 + $0x2c0] sm:$0xff]
        %v343 = vld [vmem:[%s223 + $0x2c8] sm:$0xff]
        %v344 = vld [vmem:[%s223 + $0x2d0] sm:$0xff]
        %v345 = vld [vmem:[%s223 + $0x2d8] sm:$0xff]
        %v346 = vld [vmem:[%s223 + $0x2e0] sm:$0xff]
        %v347 = vld [vmem:[%s223 + $0x2e8] sm:$0xff]
        %v348 = vld [vmem:[%s223 + $0x2f0] sm:$0xff]
        %v349 = vld [vmem:[%s223 + $0x2f8] sm:$0xff]
        %v350 = vld [vmem:[%s223 + $0x300] sm:$0xff]
        %v351 = vld [vmem:[%s223 + $0x308] sm:$0xff]
        %v352 = vld [vmem:[%s223 + $0x310] sm:$0xff]
        %v353 = vld [vmem:[%s223 + $0x318] sm:$0xff]
        %v354 = vld [vmem:[%s223 + $0x320] sm:$0xff]
        %v355 = vld [vmem:[%s223 + $0x328] sm:$0xff]
        %v356 = vld [vmem:[%s223 + $0x330] sm:$0xff]
        %v357 = vld [vmem:[%s223 + $0x338] sm:$0xff]
        %v358 = vld [vmem:[%s223 + $0x340] sm:$0xff]
        %v359 = vld [vmem:[%s223 + $0x348] sm:$0xff]
        %v360 = vld [vmem:[%s223 + $0x350] sm:$0xff]
        %v361 = vld [vmem:[%s223 + $0x358] sm:$0xff]
        %v362 = vld [vmem:[%s223 + $0x360] sm:$0xff]
        %v363 = vld [vmem:[%s223 + $0x368] sm:$0xff]
        %v364 = vld [vmem:[%s223 + $0x370] sm:$0xff]
        %v365 = vld [vmem:[%s223 + $0x378] sm:$0xff]
        %v366 = vld [vmem:[%s223 + $0x380] sm:$0xff]
        %v367 = vld [vmem:[%s223 + $0x388] sm:$0xff]
        %v368 = vld [vmem:[%s223 + $0x390] sm:$0xff]
        %v369 = vld [vmem:[%s223 + $0x398] sm:$0xff]
        %v370 = vld [vmem:[%s223 + $0x3a0] sm:$0xff]
        %v371 = vld [vmem:[%s223 + $0x3a8] sm:$0xff]
        %v372 = vld [vmem:[%s223 + $0x3b0] sm:$0xff]
        %v373 = vld [vmem:[%s223 + $0x3b8] sm:$0xff]
        %v374 = vld [vmem:[%s223 + $0x3c0] sm:$0xff]
        %v375 = vld [vmem:[%s223 + $0x3c8] sm:$0xff]
        %v376 = vld [vmem:[%s223 + $0x3d0] sm:$0xff]
        %v377 = vld [vmem:[%s223 + $0x3d8] sm:$0xff]
        %v378 = vld [vmem:[%s223 + $0x3e0] sm:$0xff]
        %v379 = vld [vmem:[%s223 + $0x3e8] sm:$0xff]
        %v380 = vld [vmem:[%s223 + $0x3f0] sm:$0xff]
        %v381 = vld [vmem:[%s223 + $0x3f8] sm:$0xff]
        %v382 = vld [vmem:[%s1] sm:$0xff]
        %v383 = vld [vmem:[%s1 + $0x8] sm:$0xff]
        %v384 = vld [vmem:[%s1 + $0x10] sm:$0xff]
        %v385 = vld [vmem:[%s1 + $0x18] sm:$0xff]
        %v386 = vld [vmem:[%s1 + $0x20] sm:$0xff]
        %v387 = vld [vmem:[%s1 + $0x28] sm:$0xff]
        %v388 = vld [vmem:[%s1 + $0x30] sm:$0xff]
        %v389 = vld [vmem:[%s1 + $0x38] sm:$0xff]
        %v390 = vld [vmem:[%s1 + $0x40] sm:$0xff]
        %v391 = vld [vmem:[%s1 + $0x48] sm:$0xff]
        %v392 = vld [vmem:[%s1 + $0x50] sm:$0xff]
        %v393 = vld [vmem:[%s1 + $0x58] sm:$0xff]
        %v394 = vld [vmem:[%s1 + $0x60] sm:$0xff]
        %v395 = vld [vmem:[%s1 + $0x68] sm:$0xff]
        %v396 = vld [vmem:[%s1 + $0x70] sm:$0xff]
        %v397 = vld [vmem:[%s1 + $0x78] sm:$0xff]
        %v398 = vadd.f32 %v254, %v255
        %v399 = vadd.f32 %v398, %v256
        %v400 = vadd.f32 %v399, %v257
        %v401 = vadd.f32 %v400, %v258
        %v402 = vadd.f32 %v401, %v259
        %v403 = vadd.f32 %v402, %v260
        %v404 = vadd.f32 %v403, %v261
        %v405 = vadd.f32 %v404, %v262
        %v406 = vadd.f32 %v405, %v263
        %v407 = vadd.f32 %v406, %v264
        %v408 = vadd.f32 %v407, %v265
        %v409 = vadd.f32 %v408, %v266
        %v410 = vadd.f32 %v409, %v267
        %v411 = vadd.f32 %v410, %v268
        %v412 = vadd.f32 %v411, %v269
        %v413 = vadd.f32 %v412, %v270
        %v414 = vadd.f32 %v413, %v271
        %v415 = vadd.f32 %v414, %v272
        %v416 = vadd.f32 %v415, %v273
        %v417 = vadd.f32 %v416, %v274
        %v418 = vadd.f32 %v417, %v275
        %v419 = vadd.f32 %v418, %v276
        %v420 = vadd.f32 %v419, %v277
        %v421 = vadd.f32 %v420, %v278
        %v422 = vadd.f32 %v421, %v279
        %v423 = vadd.f32 %v422, %v280
        %v424 = vadd.f32 %v423, %v281
        %v425 = vadd.f32 %v424, %v282
        %v426 = vadd.f32 %v425, %v283
        %v427 = vadd.f32 %v426, %v284
        %v428 = vadd.f32 %v427, %v285
        %v429 = vadd.f32 %v428, %v286
        %v430 = vadd.f32 %v429, %v287
        %v431 = vadd.f32 %v430, %v288
        %v432 = vadd.f32 %v431, %v289
        %v433 = vadd.f32 %v432, %v290
        %v434 = vadd.f32 %v433, %v291
        %v435 = vadd.f32 %v434, %v292
        %v436 = vadd.f32 %v435, %v293
        %v437 = vadd.f32 %v436, %v294
        %v438 = vadd.f32 %v437, %v295
        %v439 = vadd.f32 %v438, %v296
        %v440 = vadd.f32 %v439, %v297
        %v441 = vadd.f32 %v440, %v298
        %v442 = vadd.f32 %v441, %v299
        %v443 = vadd.f32 %v442, %v300
        %v444 = vadd.f32 %v443, %v301
        %v445 = vadd.f32 %v444, %v302
        %v446 = vadd.f32 %v445, %v303
        %v447 = vadd.f32 %v446, %v304
        %v448 = vadd.f32 %v447, %v305
        %v449 = vadd.f32 %v448, %v306
        %v450 = vadd.f32 %v449, %v307
        %v451 = vadd.f32 %v450, %v308
        %v452 = vadd.f32 %v451, %v309
        %v453 = vadd.f32 %v452, %v310
        %v454 = vadd.f32 %v453, %v311
        %v455 = vadd.f32 %v454, %v312
        %v456 = vadd.f32 %v455, %v313
        %v457 = vadd.f32 %v456, %v314
        %v458 = vadd.f32 %v457, %v315
        %v459 = vadd.f32 %v458, %v316
        %v460 = vadd.f32 %v459, %v317
        %v461 = vadd.f32 %v460, %v318
        %v462 = vadd.f32 %v461, %v319
        %v463 = vadd.f32 %v462, %v320
        %v464 = vadd.f32 %v463, %v321
        %v465 = vadd.f32 %v464, %v322
        %v466 = vadd.f32 %v465, %v323
        %v467 = vadd.f32 %v466, %v324
        %v468 = vadd.f32 %v467, %v325
        %v469 = vadd.f32 %v468, %v326
        %v470 = vadd.f32 %v469, %v327
        %v471 = vadd.f32 %v470, %v328
        %v472 = vadd.f32 %v471, %v329
        %v473 = vadd.f32 %v472, %v330
        %v474 = vadd.f32 %v473, %v331
        %v475 = vadd.f32 %v474, %v332
        %v476 = vadd.f32 %v475, %v333
        %v477 = vadd.f32 %v476, %v334
        %v478 = vadd.f32 %v477, %v335
        %v479 = vadd.f32 %v478, %v336
        %v480 = vadd.f32 %v479, %v337
        %v481 = vadd.f32 %v480, %v338
        %v482 = vadd.f32 %v481, %v339
        %v483 = vadd.f32 %v482, %v340
        %v484 = vadd.f32 %v483, %v341
        %v485 = vadd.f32 %v484, %v342
        %v486 = vadd.f32 %v485, %v343
        %v487 = vadd.f32 %v486, %v344
        %v488 = vadd.f32 %v487, %v345
        %v489 = vadd.f32 %v488, %v346
        %v490 = vadd.f32 %v489, %v347
        %v491 = vadd.f32 %v490, %v348
        %v492 = vadd.f32 %v491, %v349
        %v493 = vadd.f32 %v492, %v350
        %v494 = vadd.f32 %v493, %v351
        %v495 = vadd.f32 %v494, %v352
        %v496 = vadd.f32 %v495, %v353
        %v497 = vadd.f32 %v496, %v354
        %v498 = vadd.f32 %v497, %v355
        %v499 = vadd.f32 %v498, %v356
        %v500 = vadd.f32 %v499, %v357
        %v501 = vadd.f32 %v500, %v358
        %v502 = vadd.f32 %v501, %v359
        %v503 = vadd.f32 %v502, %v360
        %v504 = vadd.f32 %v503, %v361
        %v505 = vadd.f32 %v504, %v362
        %v506 = vadd.f32 %v505, %v363
        %v507 = vadd.f32 %v506, %v364
        %v508 = vadd.f32 %v507, %v365
        %v509 = vadd.f32 %v508, %v366
        %v510 = vadd.f32 %v509, %v367
        %v511 = vadd.f32 %v510, %v368
        %v512 = vadd.f32 %v511, %v369
        %v513 = vadd.f32 %v512, %v370
        %v514 = vadd.f32 %v513, %v371
        %v515 = vadd.f32 %v514, %v372
        %v516 = vadd.f32 %v515, %v373
        %v517 = vadd.f32 %v516, %v374
        %v518 = vadd.f32 %v517, %v375
        %v519 = vadd.f32 %v518, %v376
        %v520 = vadd.f32 %v519, %v377
        %v521 = vadd.f32 %v520, %v378
        %v522 = vadd.f32 %v521, %v379
        %v523 = vadd.f32 %v522, %v380
        %v524 = vadd.f32 %v523, %v381
        %v525 = vrot.slane %v524, 4
        %v526 = vadd.f32 %v524, %v525
        %v527 = vrot.slane %v526, 2
        %v528 = vadd.f32 %v526, %v527
        %v529 = vrot.slane %v528, 1
        %v530 = vadd.f32 %v528, %v529
        %531 = vmatpush.msra.mxu0 %v397
        %532 = vmatpush.msra.mxu0 %v396
        %533 = vmatpush.msra.mxu0 %v395
        %534 = vmatpush.msra.mxu0 %v394
        %535 = vmatpush.msra.mxu0 %v393
        %536 = vmatpush.msra.mxu0 %v392
        %537 = vmatpush.msra.mxu0 %v391
        %538 = vmatpush.msra.mxu0 %v390
        %539 = vmatpush.msra.mxu0 %v389
        %540 = vmatpush.msra.mxu0 %v388
        %541 = vmatpush.msra.mxu0 %v387
        %542 = vmatpush.msra.mxu0 %v386
        %543 = vmatpush.msra.mxu0 %v385
        %544 = vmatpush.msra.mxu0 %v384
        %545 = vmatpush.msra.mxu0 %v383
        %546 = vmatpush.msra.mxu0 %v382
        %547 = vmatmul.f32.gmra.mxu0 %v530
        %v548 = vpop.f32.mrf.mxu0
        %v549 = vadd.f32 0.0, %v548
        %550 = vdwg.mxu0
        %v551 = vrcp.pop 4096.0
        %v552 = vmul.f32 4096.0, %v551
        %v553 = vsub.f32 1.0, %v552
        %v554 = vmul.f32 %v551, %v553
        %v555 = vadd.f32 %v551, %v554
        %vm556 = vweird.f32 %v551
        %v557 = vsel %vm556, %v551, %v555
        %v558 = vmul.f32 %v549, %v557
        %vm559 = vcmask 261120
        %v561 = vsel %vm559, %v558, 0
        %v564 = vsel %vm559, %v382, 0
        %v567 = vsel %vm559, %v383, 0
        %v570 = vsel %vm559, %v384, 0
        %v573 = vsel %vm559, %v385, 0
        %v576 = vsel %vm559, %v386, 0
        %v579 = vsel %vm559, %v387, 0
        %v582 = vsel %vm559, %v388, 0
        %v585 = vsel %vm559, %v389, 0
        %v588 = vsel %vm559, %v390, 0
        %v591 = vsel %vm559, %v391, 0
        %v594 = vsel %vm559, %v392, 0
        %v597 = vsel %vm559, %v393, 0
        %v600 = vsel %vm559, %v394, 0
        %v603 = vsel %vm559, %v395, 0
        %v606 = vsel %vm559, %v396, 0
        %v609 = vsel %vm559, %v397, 0
        %611 = vmatpush.xpose.msra.mxu0 %v609
        %612 = vmatpush.xpose.msra.mxu0 %v606
        %613 = vmatpush.xpose.msra.mxu0 %v603
        %614 = vmatpush.xpose.msra.mxu0 %v600
        %615 = vmatpush.xpose.msra.mxu0 %v597
        %616 = vmatpush.xpose.msra.mxu0 %v594
        %617 = vmatpush.xpose.msra.mxu0 %v591
        %618 = vmatpush.xpose.msra.mxu0 %v588
        %619 = vmatpush.xpose.msra.mxu0 %v585
        %620 = vmatpush.xpose.msra.mxu0 %v582
        %621 = vmatpush.xpose.msra.mxu0 %v579
        %622 = vmatpush.xpose.msra.mxu0 %v576
        %623 = vmatpush.xpose.msra.mxu0 %v573
        %624 = vmatpush.xpose.msra.mxu0 %v570
        %625 = vmatpush.xpose.msra.mxu0 %v567
        %626 = vmatpush.xpose.msra.mxu0 %v564
        %627 = vmatmul.f32.gmra.mxu0 %v561
        %v628 = vpop.f32.mrf.mxu0
        %v629 = vadd.f32 0.0, %v628
        %630 = vdwg.mxu0
        %v631 = vperm.slane %v629, 0
        %v632 = vsub.f32 %v254, %v631
        %v633 = vsub.f32 %v255, %v631
        %v634 = vsub.f32 %v256, %v631
        %v635 = vsub.f32 %v257, %v631
        %v636 = vsub.f32 %v258, %v631
        %v637 = vsub.f32 %v259, %v631
        %v638 = vsub.f32 %v260, %v631
        %v639 = vsub.f32 %v261, %v631
        %v640 = vsub.f32 %v262, %v631
        %v641 = vsub.f32 %v263, %v631
        %v642 = vsub.f32 %v264, %v631
        %v643 = vsub.f32 %v265, %v631
        %v644 = vsub.f32 %v266, %v631
        %v645 = vsub.f32 %v267, %v631
        %v646 = vsub.f32 %v268, %v631
        %v647 = vsub.f32 %v269, %v631
        %v648 = vsub.f32 %v270, %v631
        %v649 = vsub.f32 %v271, %v631
        %v650 = vsub.f32 %v272, %v631
        %v651 = vsub.f32 %v273, %v631
        %v652 = vsub.f32 %v274, %v631
        %v653 = vsub.f32 %v275, %v631
        %v654 = vsub.f32 %v276, %v631
        %v655 = vsub.f32 %v277, %v631
        %v656 = vsub.f32 %v278, %v631
        %v657 = vsub.f32 %v279, %v631
        %v658 = vsub.f32 %v280, %v631
        %v659 = vsub.f32 %v281, %v631
        %v660 = vsub.f32 %v282, %v631
        %v661 = vsub.f32 %v283, %v631
        %v662 = vsub.f32 %v284, %v631
        %v663 = vsub.f32 %v285, %v631
        %v664 = vsub.f32 %v286, %v631
        %v665 = vsub.f32 %v287, %v631
        %v666 = vsub.f32 %v288, %v631
        %v667 = vsub.f32 %v289, %v631
        %v668 = vsub.f32 %v290, %v631
        %v669 = vsub.f32 %v291, %v631
        %v670 = vsub.f32 %v292, %v631
        %v671 = vsub.f32 %v293, %v631
        %v672 = vsub.f32 %v294, %v631
        %v673 = vsub.f32 %v295, %v631
        %v674 = vsub.f32 %v296, %v631
        %v675 = vsub.f32 %v297, %v631
        %v676 = vsub.f32 %v298, %v631
        %v677 = vsub.f32 %v299, %v631
        %v678 = vsub.f32 %v300, %v631
        %v679 = vsub.f32 %v301, %v631
        %v680 = vsub.f32 %v302, %v631
        %v681 = vsub.f32 %v303, %v631
        %v682 = vsub.f32 %v304, %v631
        %v683 = vsub.f32 %v305, %v631
        %v684 = vsub.f32 %v306, %v631
        %v685 = vsub.f32 %v307, %v631
        %v686 = vsub.f32 %v308, %v631
        %v687 = vsub.f32 %v309, %v631
        %v688 = vsub.f32 %v310, %v631
        %v689 = vsub.f32 %v311, %v631
        %v690 = vsub.f32 %v312, %v631
        %v691 = vsub.f32 %v313, %v631
        %v692 = vsub.f32 %v314, %v631
        %v693 = vsub.f32 %v315, %v631
        %v694 = vsub.f32 %v316, %v631
        %v695 = vsub.f32 %v317, %v631
        %v696 = vsub.f32 %v318, %v631
        %v697 = vsub.f32 %v319, %v631
        %v698 = vsub.f32 %v320, %v631
        %v699 = vsub.f32 %v321, %v631
        %v700 = vsub.f32 %v322, %v631
        %v701 = vsub.f32 %v323, %v631
        %v702 = vsub.f32 %v324, %v631
        %v703 = vsub.f32 %v325, %v631
        %v704 = vsub.f32 %v326, %v631
        %v705 = vsub.f32 %v327, %v631
        %v706 = vsub.f32 %v328, %v631
        %v707 = vsub.f32 %v329, %v631
        %v708 = vsub.f32 %v330, %v631
        %v709 = vsub.f32 %v331, %v631
        %v710 = vsub.f32 %v332, %v631
        %v711 = vsub.f32 %v333, %v631
        %v712 = vsub.f32 %v334, %v631
        %v713 = vsub.f32 %v335, %v631
        %v714 = vsub.f32 %v336, %v631
        %v715 = vsub.f32 %v337, %v631
        %v716 = vsub.f32 %v338, %v631
        %v717 = vsub.f32 %v339, %v631
        %v718 = vsub.f32 %v340, %v631
        %v719 = vsub.f32 %v341, %v631
        %v720 = vsub.f32 %v342, %v631
        %v721 = vsub.f32 %v343, %v631
        %v722 = vsub.f32 %v344, %v631
        %v723 = vsub.f32 %v345, %v631
        %v724 = vsub.f32 %v346, %v631
        %v725 = vsub.f32 %v347, %v631
        %v726 = vsub.f32 %v348, %v631
        %v727 = vsub.f32 %v349, %v631
        %v728 = vsub.f32 %v350, %v631
        %v729 = vsub.f32 %v351, %v631
        %v730 = vsub.f32 %v352, %v631
        %v731 = vsub.f32 %v353, %v631
        %v732 = vsub.f32 %v354, %v631
        %v733 = vsub.f32 %v355, %v631
        %v734 = vsub.f32 %v356, %v631
        %v735 = vsub.f32 %v357, %v631
        %v736 = vsub.f32 %v358, %v631
        %v737 = vsub.f32 %v359, %v631
        %v738 = vsub.f32 %v360, %v631
        %v739 = vsub.f32 %v361, %v631
        %v740 = vsub.f32 %v362, %v631
        %v741 = vsub.f32 %v363, %v631
        %v742 = vsub.f32 %v364, %v631
        %v743 = vsub.f32 %v365, %v631
        %v744 = vsub.f32 %v366, %v631
        %v745 = vsub.f32 %v367, %v631
        %v746 = vsub.f32 %v368, %v631
        %v747 = vsub.f32 %v369, %v631
        %v748 = vsub.f32 %v370, %v631
        %v749 = vsub.f32 %v371, %v631
        %v750 = vsub.f32 %v372, %v631
        %v751 = vsub.f32 %v373, %v631
        %v752 = vsub.f32 %v374, %v631
        %v753 = vsub.f32 %v375, %v631
        %v754 = vsub.f32 %v376, %v631
        %v755 = vsub.f32 %v377, %v631
        %v756 = vsub.f32 %v378, %v631
        %v757 = vsub.f32 %v379, %v631
        %v758 = vsub.f32 %v380, %v631
        %v759 = vsub.f32 %v381, %v631
        %v760 = vmul.f32 %v632, %v632
        %v761 = vmul.f32 %v633, %v633
        %v762 = vmul.f32 %v634, %v634
        %v763 = vmul.f32 %v635, %v635
        %v764 = vmul.f32 %v636, %v636
        %v765 = vmul.f32 %v637, %v637
        %v766 = vmul.f32 %v638, %v638
        %v767 = vmul.f32 %v639, %v639
        %v768 = vmul.f32 %v640, %v640
        %v769 = vmul.f32 %v641, %v641
        %v770 = vmul.f32 %v642, %v642
        %v771 = vmul.f32 %v643, %v643
        %v772 = vmul.f32 %v644, %v644
        %v773 = vmul.f32 %v645, %v645
        %v774 = vmul.f32 %v646, %v646
        %v775 = vmul.f32 %v647, %v647
        %v776 = vmul.f32 %v648, %v648
        %v777 = vmul.f32 %v649, %v649
        %v778 = vmul.f32 %v650, %v650
        %v779 = vmul.f32 %v651, %v651
        %v780 = vmul.f32 %v652, %v652
        %v781 = vmul.f32 %v653, %v653
        %v782 = vmul.f32 %v654, %v654
        %v783 = vmul.f32 %v655, %v655
        %v784 = vmul.f32 %v656, %v656
        %v785 = vmul.f32 %v657, %v657
        %v786 = vmul.f32 %v658, %v658
        %v787 = vmul.f32 %v659, %v659
        %v788 = vmul.f32 %v660, %v660
        %v789 = vmul.f32 %v661, %v661
        %v790 = vmul.f32 %v662, %v662
        %v791 = vmul.f32 %v663, %v663
        %v792 = vmul.f32 %v664, %v664
        %v793 = vmul.f32 %v665, %v665
        %v794 = vmul.f32 %v666, %v666
        %v795 = vmul.f32 %v667, %v667
        %v796 = vmul.f32 %v668, %v668
        %v797 = vmul.f32 %v669, %v669
        %v798 = vmul.f32 %v670, %v670
        %v799 = vmul.f32 %v671, %v671
        %v800 = vmul.f32 %v672, %v672
        %v801 = vmul.f32 %v673, %v673
        %v802 = vmul.f32 %v674, %v674
        %v803 = vmul.f32 %v675, %v675
        %v804 = vmul.f32 %v676, %v676
        %v805 = vmul.f32 %v677, %v677
        %v806 = vmul.f32 %v678, %v678
        %v807 = vmul.f32 %v679, %v679
        %v808 = vmul.f32 %v680, %v680
        %v809 = vmul.f32 %v681, %v681
        %v810 = vmul.f32 %v682, %v682
        %v811 = vmul.f32 %v683, %v683
        %v812 = vmul.f32 %v684, %v684
        %v813 = vmul.f32 %v685, %v685
        %v814 = vmul.f32 %v686, %v686
        %v815 = vmul.f32 %v687, %v687
        %v816 = vmul.f32 %v688, %v688
        %v817 = vmul.f32 %v689, %v689
        %v818 = vmul.f32 %v690, %v690
        %v819 = vmul.f32 %v691, %v691
        %v820 = vmul.f32 %v692, %v692
        %v821 = vmul.f32 %v693, %v693
        %v822 = vmul.f32 %v694, %v694
        %v823 = vmul.f32 %v695, %v695
        %v824 = vmul.f32 %v696, %v696
        %v825 = vmul.f32 %v697, %v697
        %v826 = vmul.f32 %v698, %v698
        %v827 = vmul.f32 %v699, %v699
        %v828 = vmul.f32 %v700, %v700
        %v829 = vmul.f32 %v701, %v701
        %v830 = vmul.f32 %v702, %v702
        %v831 = vmul.f32 %v703, %v703
        %v832 = vmul.f32 %v704, %v704
        %v833 = vmul.f32 %v705, %v705
        %v834 = vmul.f32 %v706, %v706
        %v835 = vmul.f32 %v707, %v707
        %v836 = vmul.f32 %v708, %v708
        %v837 = vmul.f32 %v709, %v709
        %v838 = vmul.f32 %v710, %v710
        %v839 = vmul.f32 %v711, %v711
        %v840 = vmul.f32 %v712, %v712
        %v841 = vmul.f32 %v713, %v713
        %v842 = vmul.f32 %v714, %v714
        %v843 = vmul.f32 %v715, %v715
        %v844 = vmul.f32 %v716, %v716
        %v845 = vmul.f32 %v717, %v717
        %v846 = vmul.f32 %v718, %v718
        %v847 = vmul.f32 %v719, %v719
        %v848 = vmul.f32 %v720, %v720
        %v849 = vmul.f32 %v721, %v721
        %v850 = vmul.f32 %v722, %v722
        %v851 = vmul.f32 %v723, %v723
        %v852 = vmul.f32 %v724, %v724
        %v853 = vmul.f32 %v725, %v725
        %v854 = vmul.f32 %v726, %v726
        %v855 = vmul.f32 %v727, %v727
        %v856 = vmul.f32 %v728, %v728
        %v857 = vmul.f32 %v729, %v729
        %v858 = vmul.f32 %v730, %v730
        %v859 = vmul.f32 %v731, %v731
        %v860 = vmul.f32 %v732, %v732
        %v861 = vmul.f32 %v733, %v733
        %v862 = vmul.f32 %v734, %v734
        %v863 = vmul.f32 %v735, %v735
        %v864 = vmul.f32 %v736, %v736
        %v865 = vmul.f32 %v737, %v737
        %v866 = vmul.f32 %v738, %v738
        %v867 = vmul.f32 %v739, %v739
        %v868 = vmul.f32 %v740, %v740
        %v869 = vmul.f32 %v741, %v741
        %v870 = vmul.f32 %v742, %v742
        %v871 = vmul.f32 %v743, %v743
        %v872 = vmul.f32 %v744, %v744
        %v873 = vmul.f32 %v745, %v745
        %v874 = vmul.f32 %v746, %v746
        %v875 = vmul.f32 %v747, %v747
        %v876 = vmul.f32 %v748, %v748
        %v877 = vmul.f32 %v749, %v749
        %v878 = vmul.f32 %v750, %v750
        %v879 = vmul.f32 %v751, %v751
        %v880 = vmul.f32 %v752, %v752
        %v881 = vmul.f32 %v753, %v753
        %v882 = vmul.f32 %v754, %v754
        %v883 = vmul.f32 %v755, %v755
        %v884 = vmul.f32 %v756, %v756
        %v885 = vmul.f32 %v757, %v757
        %v886 = vmul.f32 %v758, %v758
        %v887 = vmul.f32 %v759, %v759
        %v888 = vadd.f32 %v760, %v761
        %v889 = vadd.f32 %v888, %v762
        %v890 = vadd.f32 %v889, %v763
        %v891 = vadd.f32 %v890, %v764
        %v892 = vadd.f32 %v891, %v765
        %v893 = vadd.f32 %v892, %v766
        %v894 = vadd.f32 %v893, %v767
        %v895 = vadd.f32 %v894, %v768
        %v896 = vadd.f32 %v895, %v769
        %v897 = vadd.f32 %v896, %v770
        %v898 = vadd.f32 %v897, %v771
        %v899 = vadd.f32 %v898, %v772
        %v900 = vadd.f32 %v899, %v773
        %v901 = vadd.f32 %v900, %v774
        %v902 = vadd.f32 %v901, %v775
        %v903 = vadd.f32 %v902, %v776
        %v904 = vadd.f32 %v903, %v777
        %v905 = vadd.f32 %v904, %v778
        %v906 = vadd.f32 %v905, %v779
        %v907 = vadd.f32 %v906, %v780
        %v908 = vadd.f32 %v907, %v781
        %v909 = vadd.f32 %v908, %v782
        %v910 = vadd.f32 %v909, %v783
        %v911 = vadd.f32 %v910, %v784
        %v912 = vadd.f32 %v911, %v785
        %v913 = vadd.f32 %v912, %v786
        %v914 = vadd.f32 %v913, %v787
        %v915 = vadd.f32 %v914, %v788
        %v916 = vadd.f32 %v915, %v789
        %v917 = vadd.f32 %v916, %v790
        %v918 = vadd.f32 %v917, %v791
        %v919 = vadd.f32 %v918, %v792
        %v920 = vadd.f32 %v919, %v793
        %v921 = vadd.f32 %v920, %v794
        %v922 = vadd.f32 %v921, %v795
        %v923 = vadd.f32 %v922, %v796
        %v924 = vadd.f32 %v923, %v797
        %v925 = vadd.f32 %v924, %v798
        %v926 = vadd.f32 %v925, %v799
        %v927 = vadd.f32 %v926, %v800
        %v928 = vadd.f32 %v927, %v801
        %v929 = vadd.f32 %v928, %v802
        %v930 = vadd.f32 %v929, %v803
        %v931 = vadd.f32 %v930, %v804
        %v932 = vadd.f32 %v931, %v805
        %v933 = vadd.f32 %v932, %v806
        %v934 = vadd.f32 %v933, %v807
        %v935 = vadd.f32 %v934, %v808
        %v936 = vadd.f32 %v935, %v809
        %v937 = vadd.f32 %v936, %v810
        %v938 = vadd.f32 %v937, %v811
        %v939 = vadd.f32 %v938, %v812
        %v940 = vadd.f32 %v939, %v813
        %v941 = vadd.f32 %v940, %v814
        %v942 = vadd.f32 %v941, %v815
        %v943 = vadd.f32 %v942, %v816
        %v944 = vadd.f32 %v943, %v817
        %v945 = vadd.f32 %v944, %v818
        %v946 = vadd.f32 %v945, %v819
        %v947 = vadd.f32 %v946, %v820
        %v948 = vadd.f32 %v947, %v821
        %v949 = vadd.f32 %v948, %v822
        %v950 = vadd.f32 %v949, %v823
        %v951 = vadd.f32 %v950, %v824
        %v952 = vadd.f32 %v951, %v825
        %v953 = vadd.f32 %v952, %v826
        %v954 = vadd.f32 %v953, %v827
        %v955 = vadd.f32 %v954, %v828
        %v956 = vadd.f32 %v955, %v829
        %v957 = vadd.f32 %v956, %v830
        %v958 = vadd.f32 %v957, %v831
        %v959 = vadd.f32 %v958, %v832
        %v960 = vadd.f32 %v959, %v833
        %v961 = vadd.f32 %v960, %v834
        %v962 = vadd.f32 %v961, %v835
        %v963 = vadd.f32 %v962, %v836
        %v964 = vadd.f32 %v963, %v837
        %v965 = vadd.f32 %v964, %v838
        %v966 = vadd.f32 %v965, %v839
        %v967 = vadd.f32 %v966, %v840
        %v968 = vadd.f32 %v967, %v841
        %v969 = vadd.f32 %v968, %v842
        %v970 = vadd.f32 %v969, %v843
        %v971 = vadd.f32 %v970, %v844
        %v972 = vadd.f32 %v971, %v845
        %v973 = vadd.f32 %v972, %v846
        %v974 = vadd.f32 %v973, %v847
        %v975 = vadd.f32 %v974, %v848
        %v976 = vadd.f32 %v975, %v849
        %v977 = vadd.f32 %v976, %v850
        %v978 = vadd.f32 %v977, %v851
        %v979 = vadd.f32 %v978, %v852
        %v980 = vadd.f32 %v979, %v853
        %v981 = vadd.f32 %v980, %v854
        %v982 = vadd.f32 %v981, %v855
        %v983 = vadd.f32 %v982, %v856
        %v984 = vadd.f32 %v983, %v857
        %v985 = vadd.f32 %v984, %v858
        %v986 = vadd.f32 %v985, %v859
        %v987 = vadd.f32 %v986, %v860
        %v988 = vadd.f32 %v987, %v861
        %v989 = vadd.f32 %v988, %v862
        %v990 = vadd.f32 %v989, %v863
        %v991 = vadd.f32 %v990, %v864
        %v992 = vadd.f32 %v991, %v865
        %v993 = vadd.f32 %v992, %v866
        %v994 = vadd.f32 %v993, %v867
        %v995 = vadd.f32 %v994, %v868
        %v996 = vadd.f32 %v995, %v869
        %v997 = vadd.f32 %v996, %v870
        %v998 = vadd.f32 %v997, %v871
        %v999 = vadd.f32 %v998, %v872
        %v1000 = vadd.f32 %v999, %v873
        %v1001 = vadd.f32 %v1000, %v874
        %v1002 = vadd.f32 %v1001, %v875
        %v1003 = vadd.f32 %v1002, %v876
        %v1004 = vadd.f32 %v1003, %v877
        %v1005 = vadd.f32 %v1004, %v878
        %v1006 = vadd.f32 %v1005, %v879
        %v1007 = vadd.f32 %v1006, %v880
        %v1008 = vadd.f32 %v1007, %v881
        %v1009 = vadd.f32 %v1008, %v882
        %v1010 = vadd.f32 %v1009, %v883
        %v1011 = vadd.f32 %v1010, %v884
        %v1012 = vadd.f32 %v1011, %v885
        %v1013 = vadd.f32 %v1012, %v886
        %v1014 = vadd.f32 %v1013, %v887
        %v1015 = vrot.slane %v1014, 4
        %v1016 = vadd.f32 %v1014, %v1015
        %v1017 = vrot.slane %v1016, 2
        %v1018 = vadd.f32 %v1016, %v1017
        %v1019 = vrot.slane %v1018, 1
        %v1020 = vadd.f32 %v1018, %v1019
        %1021 = vmatpush.msra.mxu0 %v397
        %1022 = vmatpush.msra.mxu0 %v396
        %1023 = vmatpush.msra.mxu0 %v395
        %1024 = vmatpush.msra.mxu0 %v394
        %1025 = vmatpush.msra.mxu0 %v393
        %1026 = vmatpush.msra.mxu0 %v392
        %1027 = vmatpush.msra.mxu0 %v391
        %1028 = vmatpush.msra.mxu0 %v390
        %1029 = vmatpush.msra.mxu0 %v389
        %1030 = vmatpush.msra.mxu0 %v388
        %1031 = vmatpush.msra.mxu0 %v387
        %1032 = vmatpush.msra.mxu0 %v386
        %1033 = vmatpush.msra.mxu0 %v385
        %1034 = vmatpush.msra.mxu0 %v384
        %1035 = vmatpush.msra.mxu0 %v383
        %1036 = vmatpush.msra.mxu0 %v382
        %1037 = vmatmul.f32.gmra.mxu0 %v1020
        %v1038 = vpop.f32.mrf.mxu0
        %v1039 = vadd.f32 0.0, %v1038
        %1040 = vdwg.mxu0
        %v1041 = vmul.f32 %v1039, %v557
        %v1043 = vsel %vm559, %v1041, 0
        %1045 = vmatpush.xpose.msra.mxu0 %v609
        %1046 = vmatpush.xpose.msra.mxu0 %v606
        %1047 = vmatpush.xpose.msra.mxu0 %v603
        %1048 = vmatpush.xpose.msra.mxu0 %v600
        %1049 = vmatpush.xpose.msra.mxu0 %v597
        %1050 = vmatpush.xpose.msra.mxu0 %v594
        %1051 = vmatpush.xpose.msra.mxu0 %v591
        %1052 = vmatpush.xpose.msra.mxu0 %v588
        %1053 = vmatpush.xpose.msra.mxu0 %v585
        %1054 = vmatpush.xpose.msra.mxu0 %v582
        %1055 = vmatpush.xpose.msra.mxu0 %v579
        %1056 = vmatpush.xpose.msra.mxu0 %v576
        %1057 = vmatpush.xpose.msra.mxu0 %v573
        %1058 = vmatpush.xpose.msra.mxu0 %v570
        %1059 = vmatpush.xpose.msra.mxu0 %v567
        %1060 = vmatpush.xpose.msra.mxu0 %v564
        %1061 = vmatmul.f32.gmra.mxu0 %v1043
        %v1062 = vpop.f32.mrf.mxu0
        %v1063 = vadd.f32 1e-05, %v1062
        %1064 = vdwg.mxu0
        %v1065 = vrsqrt.pop %v1063
        %v1066 = vmul.f32 %v1065, %v1063
        %v1067 = vmul.f32 %v1066, %v1065
        %v1068 = vmul.f32 0.5, %v1067
        %v1069 = vsub.f32 1.5, %v1068
        %v1070 = vmul.f32 %v1065, %v1069
        %vm1071 = vweird.f32 %v1063
        %vm1072 = vweird.f32 %v1065
        %vm1073 = vmor %vm1071, %vm1072
        %v1074 = vsel %vm1073, %v1065, %v1070
        %v1075 = vld [vmem:[%s2] sm:$0x1]
        %v1076 = vmul.f32 %v1075, %v1074
        %v1077 = vld [vmem:[%s3] sm:$0x1]
        %v1078 = vmul.f32 %v629, %v1076
        %v1079 = vsub.f32 %v1077, %v1078
        %1080 = vst [vmem:[%s247] sm:$0x1] %v1076
        %1081 = vst [vmem:[%s253] sm:$0x1] %v1079
        %s1082 = sand.u32 %s123, 1
        %s1083 = scalar_lea.sflag [#allocation4], %s1082
        %s1084 = sand.u32 %s123, 1
        %s1085 = scalar_lea.vmem [#allocation5], %s1084
        %s1086 = sand.u32 %s149, 1
        %s1087 = scalar_lea.sflag [#allocation7], %s1086
        %s1088 = sand.u32 %s149, 1
        %s1089 = scalar_lea.vmem [#allocation6], %s1088
        // Predicated region
        $region41: #{tpu_custom_call.1} parent=35 // pred_check
          %p1090 = pneg %p133
        $region42: #{tpu_custom_call.1} parent=35 // pred_check_branch
          %1092 = sbr.rel (%p1090) target = $region44
        $region43: #{tpu_custom_call.1} parent=35 // pred_region
          %1094 = vsyncadd %s1083, 0
          %s1095 = scalar_lea.hbm %s4, %s26
          %s1097 = sshll.u32 %s1085, 4
          %s1098 = int_to_ptr.vmem [resolvable:$true] %s1097
          %s1099 = sshll.u32 %s1095, 4
          %s1100 = int_to_ptr.hbm [resolvable:$true] %s1099
          %1102 = dma.vmem_to_hbm [thread:$0]  %s1098, 16, %s1100, %s1083
        $region44: #{tpu_custom_call.1} parent=35 // pred_fallthru
          _
        // Predicated region
        $region45: #{tpu_custom_call.1} parent=35 // pred_check
          %p1103 = pneg %p159
        $region46: #{tpu_custom_call.1} parent=35 // pred_check_branch
          %1105 = sbr.rel (%p1103) target = $region48
        $region47: #{tpu_custom_call.1} parent=35 // pred_region
          %1107 = vsyncadd %s1087, 0
          %s1108 = scalar_lea.hbm %s5, %s26
          %s1110 = sshll.u32 %s1089, 4
          %s1111 = int_to_ptr.vmem [resolvable:$true] %s1110
          %s1112 = sshll.u32 %s1108, 4
          %s1113 = int_to_ptr.hbm [resolvable:$true] %s1112
          %1115 = dma.vmem_to_hbm [thread:$0]  %s1111, 16, %s1113, %s1087
        $region48: #{tpu_custom_call.1} parent=35 // pred_fallthru
          _
      $region36: #{tpu_custom_call.1} parent=5 // pred_fallthru
        _
      %p1116 = scmp.le.s32.totalorder 2, %s21
      // Predicated region
      $region49: #{tpu_custom_call.1} parent=5 // pred_check
        %p1117 = pneg %p1116
      $region50: #{tpu_custom_call.1} parent=5 // pred_check_branch
        %1119 = sbr.rel (%p1117) target = $region52
      $region51: #{tpu_custom_call.1} parent=5 // pred_region
        %s1120 = ssub.s32 %s21, 2
        // Predicated region
        $region53: #{tpu_custom_call.1} parent=51 // pred_check
          %p1121 = pneg %p139
        $region54: #{tpu_custom_call.1} parent=51 // pred_check_branch
          %1123 = sbr.rel (%p1121) target = $region56
        $region55: #{tpu_custom_call.1} parent=51 // pred_region
          %s1124 = sand.u32 %s124, 1
          %s1125 = scalar_lea.sflag [#allocation4], %s1124
          %s1126 = sand.u32 %s124, 1
          %s1127 = scalar_lea.vmem [#allocation5], %s1126
          %1129 = dma.done %s1125, 16
        $region56: #{tpu_custom_call.1} parent=51 // pred_fallthru
          _
        // Predicated region
        $region57: #{tpu_custom_call.1} parent=51 // pred_check
          %p1130 = pneg %p165
        $region58: #{tpu_custom_call.1} parent=51 // pred_check_branch
          %1132 = sbr.rel (%p1130) target = $region60
        $region59: #{tpu_custom_call.1} parent=51 // pred_region
          %s1133 = sand.u32 %s150, 1
          %s1134 = scalar_lea.sflag [#allocation7], %s1133
          %s1135 = sand.u32 %s150, 1
          %s1136 = scalar_lea.vmem [#allocation6], %s1135
          %1138 = dma.done %s1134, 16
        $region60: #{tpu_custom_call.1} parent=51 // pred_fallthru
          _
      $region52: #{tpu_custom_call.1} parent=5 // pred_fallthru
        _
    $region6: #{tpu_custom_call.1} parent=1 // loop_footer
      %s25 = sadd.s32 1, %s21
    $region7: #{tpu_custom_call.1} parent=1 // loop_footer_branch
      %20 = sbr.rel target = $region3
    $region8: #{tpu_custom_call.1} parent=1 // loop_exit
      _
    %1139 = vsyncpa [#allocation3], 1
    %s1140 = scalar_lea.sflag [#allocation3], 1
    %1141 = vsyncpa %s1140, 1
    %1142 = vsyncpa [#allocation4], 1
    %s1143 = scalar_lea.sflag [#allocation4], 1
    %1144 = vsyncpa %s1143, 1
    %1145 = vsyncpa [#allocation7], 1
    %s1146 = scalar_lea.sflag [#allocation7], 1
    %1147 = vsyncpa %s1146, 1

</llo_original>
